<compile_context>
chip_gen: v7x
topology: tpu7x:2x2x1
jax: 0.10.0
libtpu: 0.0.40
codegen_flags: <defaults>
</compile_context>

<pallas_src>
import functools
import math

import jax
import jax.numpy as jnp
from jax.experimental import pallas as pl
from jax.experimental.pallas import tpu as pltpu

_LEAKY_SLOPE = 0.2


def _lsgan_gen_loss_kernel(fakes_ref, w1_ref, b1_ref, w2t_ref, b2_ref,
                           sse_ref, acc_ref, *, c):
    """Grid: axis 0 tiles B (parallel), axis 1 tiles D (reduction).

    Per D step : acc (tb, Hp) += fakes_tile (tb, td) @ w1_tile (td, Hp)  [MXU]
    Last D step: bias + LeakyReLU + layer-2 row-reduce + per-B-tile SSE [VPU/XLU]
    """
    k = pl.program_id(1)

    @pl.when(k == 0)
    def _init():
        acc_ref[...] = jnp.zeros_like(acc_ref)

    # Layer-1 partial contraction over this D tile (native dtype in, f32 acc).
    acc_ref[...] += jnp.dot(fakes_ref[...], w1_ref[...],
                            preferred_element_type=jnp.float32)

    @pl.when(k == pl.num_programs(1) - 1)
    def _finalize():
        pre = acc_ref[...] + b1_ref[...].astype(jnp.float32)          # (tb, Hp)
        h = jnp.where(pre > 0, pre, _LEAKY_SLOPE * pre)                # LeakyReLU
        # Layer 2 (Hh -> 1) on VPU/XLU: avoids a wasteful N=1 MXU pass.
        fakes_out = (jnp.sum(h * w2t_ref[...].astype(jnp.float32),
                             axis=1, keepdims=True)
                     + b2_ref[0, 0])                                   # (tb, 1)
        err = fakes_out - c
        sse = jnp.sum(err * err)                                       # scalar
        # Lane-dense broadcast store of the partial sum-of-squared-errors.
        sse_ref[...] = jnp.full(sse_ref.shape, sse, jnp.float32)


def _pad_axis(x, axis, multiple):
    """Zero-pad `axis` of x up to a multiple; zeros contribute exactly 0."""
    pad = (-x.shape[axis]) % multiple
    if pad == 0:
        return x
    widths = [(0, 0)] * x.ndim
    widths[axis] = (0, pad)
    return jnp.pad(x, widths)


def _pad_axis_to(x, axis, target):
    """Zero-pad `axis` of x up to an exact target size (no-op if equal)."""
    if x.shape[axis] == target:
        return x
    widths = [(0, 0)] * x.ndim
    widths[axis] = (0, target - x.shape[axis])
    return jnp.pad(x, widths)


def _vmem_capacity_bytes():
    """Generation-aware VMEM capacity (64 MiB v7x, 128 MiB v5e/v6e)."""
    try:
        return int(pltpu.get_tpu_info().vmem_capacity_bytes)
    except Exception:
        return 64 * 1024 * 1024  # conservative fallback (v7x-sized)


def _choose_tiles(batch, d_padded, h_padded, fakes_itemsize, w1_itemsize):
    """Pick (tb, td, vmem_limit_bytes).

    tb : B tile for the leading "parallel" axis (only when B divides cleanly,
         so no B padding / row masking is ever needed).
    td : largest lane-aligned D tile whose double-buffered streamed working
         set (fakes tile + Hp-wide w1 tile) fits the per-generation budget.
    """
    # --- B tile (parallel axis; pays off on v7x's two TensorCores) ---------
    if batch >= 512 and batch % 256 == 0:
        tb = 256
    elif batch >= 256 and batch % 128 == 0:
        tb = 128
    else:
        tb = batch                          # single B block, no padding needed

    # --- generation-aware VMEM budget ---------------------------------------
    cap = _vmem_capacity_bytes()
    limit = max(16 * 1024 * 1024, int(0.75 * cap))   # headroom for compiler scratch

    resident = (tb * h_padded * 4            # f32 accumulator scratch
                + 2 * h_padded * 4           # b1 + w2^T (resident, f32)
                + 8 * 128 * 4                # partial-SSE output block
                + (1 << 14))                 # slack

    # Largest-first: whole D in one step if it fits, else 2048 -> ... -> 128.
    candidates = [d_padded] + [c for c in (2048, 1024, 512, 256, 128)
                               if c < d_padded and d_padded % c == 0]
    td = None
    for cand in candidates:
        streamed = 2 * (tb * cand * fakes_itemsize + cand * h_padded * w1_itemsize)
        if streamed + resident <= int(0.7 * limit):
            td = cand
            break
    if td is None:                            # degenerate: even 128 is tight
        td = 128 if d_padded % 128 == 0 else d_padded

    streamed = 2 * (tb * td * fakes_itemsize + td * h_padded * w1_itemsize)
    need = streamed + resident
    vmem_limit = int(min(limit, max(16 * 1024 * 1024, int(1.5 * need))))
    return tb, td, vmem_limit


class LSGANGeneratorLoss:
    """JAX/Pallas port of the PyTorch LSGANGeneratorLoss forward pass."""

    def __init__(self, c: float = 1.0):
        self.c = c

    def __call__(self, disc_params, fakes, reals=None):
        # `reals` is accepted for parity with the PyTorch forward() signature
        # but is unused by the generator loss (same as the reference module).
        del reals
        B = fakes.shape[0]
        fakes_flat = fakes.reshape(B, -1)              # native dtype, no cast

        # Discriminator params are expected pre-padded (see
        # make_discriminator_params); the _pad_axis calls below are exact
        # no-ops in that case (they return the input unchanged).
        w1 = _pad_axis(_pad_axis(disc_params["w1"], 0, 128), 1, 128)   # (Dp, Hp)
        b1 = _pad_axis(disc_params["b1"].reshape(1, -1), 1, 128)       # (1, Hp)
        w2t = _pad_axis(disc_params["w2"].reshape(1, -1), 1, 128)      # (1, Hp)
        b2 = disc_params["b2"].reshape(1, 1).astype(jnp.float32)
        Dp, Hp = w1.shape

        # Pad fakes only when the flattened feature dim is not lane-aligned
        # (zero rows of padded w1 x zero padded features contribute exactly 0).
        fakes_flat = _pad_axis_to(fakes_flat, 1, Dp)

        fakes_itemsize = jnp.dtype(fakes_flat.dtype).itemsize
        w1_itemsize = jnp.dtype(w1.dtype).itemsize
        tb, td, vmem_limit = _choose_tiles(B, Dp, Hp, fakes_itemsize, w1_itemsize)
        nb = B // tb
        nk = Dp // td
        grid = (nb, nk)

        cost = pl.CostEstimate(
            flops=2 * B * Dp * Hp + 6 * B * Hp + 4 * B,
            transcendentals=0,
            bytes_accessed=(B * Dp * fakes_itemsize      # fakes stream
                            + Dp * Hp * w1_itemsize      # w1 stream
                            + 2 * Hp * 4 + 4             # b1, w2^T, b2 (f32)
                            + nb * 8 * 128 * 4),         # partial-SSE output
        )

        kernel = functools.partial(_lsgan_gen_loss_kernel, c=float(self.c))

        # TODO(synk): an int8-quantized w1 path would halve the dominant HBM
        # stream on v5e/v6e (int MXU); not portable to v7x (fp8-only MXU).
        partials = pl.pallas_call(
            kernel,
            out_shape=jax.ShapeDtypeStruct((nb, 8, 128), jnp.float32),
            grid_spec=pltpu.PrefetchScalarGridSpec(
                num_scalar_prefetch=0,
                grid=grid,
                in_specs=[
                    pl.BlockSpec((tb, td), lambda i, k: (i, k)),   # fakes tile
                    pl.BlockSpec((td, Hp), lambda i, k: (k, 0)),   # w1 D-tile
                    pl.BlockSpec((1, Hp), lambda i, k: (0, 0)),    # b1 (resident)
                    pl.BlockSpec((1, Hp), lambda i, k: (0, 0)),    # w2^T (resident)
                    pl.BlockSpec(memory_space=pltpu.MemorySpace.SMEM),  # b2
                ],
                out_specs=pl.BlockSpec((1, 8, 128), lambda i, k: (i, 0, 0)),
                scratch_shapes=[pltpu.VMEM((tb, Hp), jnp.float32)],
            ),
            compiler_params=pltpu.CompilerParams(
                # B tiles are independent (megacore-parallel on v7x);
                # D is the reduction axis.
                dimension_semantics=("parallel", "arbitrary"),
                vmem_limit_bytes=vmem_limit,
            ),
            cost_estimate=cost,
        )(fakes_flat, w1, b1, w2t, b2)

        # Final tiny reduction in the wrapper: mean over the (B, 1) disc output.
        total_sse = jnp.sum(partials[:, 0, 0])
        return 0.5 * total_sse / B


def make_discriminator_params(key, in_dim, hidden):
    """Deterministic synthetic discriminator weights (2-layer MLP).

    Weights are pre-padded to lane-aligned (multiple-of-128) D and Hh once at
    setup time so the per-call path never copies them.  w1 is kept in bf16
    (the dominant byte stream); tiny vectors stay f32.
    """
    k1, k2 = jax.random.split(key)
    w1 = (jax.random.normal(k1, (in_dim, hidden), jnp.float32)
          * (1.0 / math.sqrt(in_dim))).astype(jnp.bfloat16)
    w2 = (jax.random.normal(k2, (hidden, 1), jnp.float32)
          * (1.0 / math.sqrt(hidden)))
    b1 = jnp.zeros((1, hidden), jnp.float32)
    b2 = jnp.zeros((1, 1), jnp.float32)
    # Pre-pad once (zero rows/cols contribute exactly 0 through both layers).
    w1 = _pad_axis(_pad_axis(w1, 0, 128), 1, 128)
    b1 = _pad_axis(b1, 1, 128)
    w2 = _pad_axis(w2, 0, 128)
    return {"w1": w1, "b1": b1, "w2": w2, "b2": b2}


if __name__ == "__main__":
    B, C, H, W = 2, 4, 16, 16
    HIDDEN = 128  # lane-aligned hidden width (multiple of 128)

    root = jax.random.PRNGKey(0)
    k_fake, k_real, k_disc = jax.random.split(root, 3)

    fakes = jax.random.normal(k_fake, (B, C, H, W), jnp.bfloat16)
    reals = jax.random.normal(k_real, (B, C, H, W), jnp.bfloat16)
    disc_params = make_discriminator_params(k_disc, C * H * W, HIDDEN)

    loss_mod = LSGANGeneratorLoss(c=1.0)
    loss = loss_mod(disc_params, fakes, reals)
    jax.block_until_ready(loss)
    print("KERNEL_OK")
</pallas_src>

<mosaic_0001>
module attributes {stable_mosaic.version = 11 : i64} {
  func.func @_lsgan_gen_loss_kernel(%arg0: i32, %arg1: i32, %arg2: memref<2x1024xbf16, #tpu.memory_space<vmem>>, %arg3: memref<1024x128xbf16, #tpu.memory_space<vmem>>, %arg4: memref<1x128xf32, #tpu.memory_space<vmem>>, %arg5: memref<1x128xf32, #tpu.memory_space<vmem>>, %arg6: memref<1x1xf32, #tpu.memory_space<smem>>, %arg7: memref<1x8x128xf32, #tpu.memory_space<vmem>>, %arg8: memref<2x128xf32, #tpu.memory_space<vmem>>) attributes {dimension_semantics = [#tpu.dimension_semantics<parallel>, #tpu.dimension_semantics<arbitrary>], iteration_bounds = array<i64: 1, 1>, scalar_prefetch = 0 : i64, scratch_operands = 1 : i64, tpu.core_type = #tpu.core_type<tc>, window_params = [{transform_indices = @transform_0, window_bounds = array<i64: 2, 1024>}, {transform_indices = @transform_1, window_bounds = array<i64: 1024, 128>}, {pipeline_mode = #tpu.pipeline_mode<synchronous>, transform_indices = @transform_2, window_bounds = array<i64: 1, 128>}, {pipeline_mode = #tpu.pipeline_mode<synchronous>, transform_indices = @transform_3, window_bounds = array<i64: 1, 128>}, {transform_indices = @transform_4, window_bounds = array<i64: 1, 1>}, {transform_indices = @transform_5, window_bounds = array<i64: 1, 8, 128>}]} {
    %c0_i32 = arith.constant 0 : i32
    %0 = arith.cmpi eq, %arg1, %c0_i32 : i32
    %1 = arith.extui %0 : i1 to i32
    %c0_i32_0 = arith.constant 0 : i32
    %2 = arith.cmpi ne, %1, %c0_i32_0 : i32
    scf.if %2 {
      %cst_10 = arith.constant 0.000000e+00 : f32
      %12 = vector.broadcast %cst_10 : f32 to vector<2x128xf32>
      %c0_11 = arith.constant 0 : index
      %c0_12 = arith.constant 0 : index
      %13 = vector.load %arg8[%c0_11, %c0_12] : memref<2x128xf32, #tpu.memory_space<vmem>>, vector<2x128xf32>
      tpu.vector_store %arg8[%c0_11, %c0_12], %12 {strides = array<i32>} : memref<2x128xf32, #tpu.memory_space<vmem>>, vector<2x128xf32>,
    } else {
    }
    %c0 = arith.constant 0 : index
    %c0_1 = arith.constant 0 : index
    %3 = vector.load %arg8[%c0, %c0_1] : memref<2x128xf32, #tpu.memory_space<vmem>>, vector<2x128xf32>
    %c0_2 = arith.constant 0 : index
    %c0_3 = arith.constant 0 : index
    %4 = vector.load %arg2[%c0_2, %c0_3] : memref<2x1024xbf16, #tpu.memory_space<vmem>>, vector<2x1024xbf16>
    %c0_4 = arith.constant 0 : index
    %c0_5 = arith.constant 0 : index
    %5 = vector.load %arg3[%c0_4, %c0_5] : memref<1024x128xbf16, #tpu.memory_space<vmem>>, vector<1024x128xbf16>
    %cst = arith.constant dense<0.000000e+00> : vector<2x128xf32>
    %6 = tpu.matmul %4, %5, %cst {dimension_numbers = #tpu.dot_dimension_numbers<[1], [0], [0], [1], [0, 0, 1, 1], [], []>} : vector<2x1024xbf16>, vector<1024x128xbf16>, vector<2x128xf32> -> vector<2x128xf32>
    %7 = arith.addf %3, %6 : vector<2x128xf32>
    %c0_6 = arith.constant 0 : index
    %c0_7 = arith.constant 0 : index
    %8 = vector.load %arg8[%c0_6, %c0_7] : memref<2x128xf32, #tpu.memory_space<vmem>>, vector<2x128xf32>
    tpu.vector_store %arg8[%c0_6, %c0_7], %7 {strides = array<i32>} : memref<2x128xf32, #tpu.memory_space<vmem>>, vector<2x128xf32>,
    %c0_i32_8 = arith.constant 0 : i32
    %9 = arith.cmpi eq, %arg1, %c0_i32_8 : i32
    %10 = arith.extui %9 : i1 to i32
    %c0_i32_9 = arith.constant 0 : i32
    %11 = arith.cmpi ne, %10, %c0_i32_9 : i32
    scf.if %11 {
      %c0_10 = arith.constant 0 : index
      %c0_11 = arith.constant 0 : index
      %12 = vector.load %arg8[%c0_10, %c0_11] : memref<2x128xf32, #tpu.memory_space<vmem>>, vector<2x128xf32>
      %c0_12 = arith.constant 0 : index
      %c0_13 = arith.constant 0 : index
      %13 = vector.load %arg4[%c0_12, %c0_13] : memref<1x128xf32, #tpu.memory_space<vmem>>, vector<1x128xf32>
      %14 = vector.broadcast %13 : vector<1x128xf32> to vector<2x128xf32>
      %15 = arith.addf %12, %14 : vector<2x128xf32>
      %cst_14 = arith.constant 0.000000e+00 : f32
      %16 = vector.broadcast %cst_14 : f32 to vector<2x128xf32>
      %17 = arith.cmpf ogt, %15, %16 : vector<2x128xf32>
      %cst_15 = arith.constant 2.000000e-01 : f32
      %18 = vector.broadcast %cst_15 : f32 to vector<2x128xf32>
      %19 = arith.mulf %18, %15 : vector<2x128xf32>
      %20 = arith.select %17, %15, %19 : vector<2x128xi1>, vector<2x128xf32>
      %c0_16 = arith.constant 0 : index
      %c0_17 = arith.constant 0 : index
      %21 = vector.load %arg5[%c0_16, %c0_17] : memref<1x128xf32, #tpu.memory_space<vmem>>, vector<1x128xf32>
      %22 = vector.broadcast %21 : vector<1x128xf32> to vector<2x128xf32>
      %23 = arith.mulf %20, %22 : vector<2x128xf32>
      %cst_18 = arith.constant dense<0.000000e+00> : vector<2xf32>
      %24 = vector.multi_reduction <add>, %23, %cst_18 [1] : vector<2x128xf32> to vector<2xf32>
      %25 = vector.shape_cast %24 : vector<2xf32> to vector<2x1xf32>
      %c0_19 = arith.constant 0 : index
      %c0_20 = arith.constant 0 : index
      %26 = memref.load %arg6[%c0_19, %c0_20] : memref<1x1xf32, #tpu.memory_space<smem>>
      %27 = vector.broadcast %26 : f32 to vector<2x1xf32>
      %28 = arith.addf %25, %27 : vector<2x1xf32>
      %cst_21 = arith.constant 1.000000e+00 : f32
      %29 = vector.broadcast %cst_21 : f32 to vector<2x1xf32>
      %30 = arith.subf %28, %29 : vector<2x1xf32>
      %31 = arith.mulf %30, %30 : vector<2x1xf32>
      %32 = vector.shape_cast %31 : vector<2x1xf32> to vector<1x2x1xf32>
      %cst_22 = arith.constant dense<0.000000e+00> : vector<1xf32>
      %33 = vector.multi_reduction <add>, %32, %cst_22 [1, 2] : vector<1x2x1xf32> to vector<1xf32>
      %34 = vector.shape_cast %33 : vector<1xf32> to vector<1x1x1xf32>
      %35 = vector.extract %34[0, 0, 0] : f32 from vector<1x1x1xf32>
      %36 = vector.broadcast %35 : f32 to vector<1x8x128xf32>
      %c0_23 = arith.constant 0 : index
      %c0_24 = arith.constant 0 : index
      %c0_25 = arith.constant 0 : index
      %37 = vector.load %arg7[%c0_23, %c0_24, %c0_25] : memref<1x8x128xf32, #tpu.memory_space<vmem>>, vector<1x8x128xf32>
      tpu.vector_store %arg7[%c0_23, %c0_24, %c0_25], %36 {strides = array<i32>} : memref<1x8x128xf32, #tpu.memory_space<vmem>>, vector<1x8x128xf32>,
    } else {
    }
    return
  }
  func.func @transform_0(%arg0: i32, %arg1: i32) -> (i32, i32) {
    %c0_i32 = arith.constant 0 : i32
    return %arg0, %arg1 : i32, i32
  }
  func.func @transform_1(%arg0: i32, %arg1: i32) -> (i32, i32) {
    %c0_i32 = arith.constant 0 : i32
    %c0_i32_0 = arith.constant 0 : i32
    return %arg1, %c0_i32 : i32, i32
  }
  func.func @transform_2(%arg0: i32, %arg1: i32) -> (i32, i32) {
    %c0_i32 = arith.constant 0 : i32
    %c0_i32_0 = arith.constant 0 : i32
    %c0_i32_1 = arith.constant 0 : i32
    return %c0_i32, %c0_i32_0 : i32, i32
  }
  func.func @transform_3(%arg0: i32, %arg1: i32) -> (i32, i32) {
    %c0_i32 = arith.constant 0 : i32
    %c0_i32_0 = arith.constant 0 : i32
    %c0_i32_1 = arith.constant 0 : i32
    return %c0_i32, %c0_i32_0 : i32, i32
  }
  func.func @transform_4(%arg0: i32, %arg1: i32) -> (i32, i32) {
    %c0_i32 = arith.constant 0 : i32
    %c0_i32_0 = arith.constant 0 : i32
    %c0_i32_1 = arith.constant 0 : i32
    return %c0_i32, %c0_i32_0 : i32, i32
  }
  func.func @transform_5(%arg0: i32, %arg1: i32) -> (i32, i32, i32) {
    %c0_i32 = arith.constant 0 : i32
    %c0_i32_0 = arith.constant 0 : i32
    %c0_i32_1 = arith.constant 0 : i32
    return %arg0, %c0_i32, %c0_i32_0 : i32, i32, i32
  }
}

</mosaic_0001>

<llo_original>
// kernel: tpu_custom_call.1
$region0: #{tpu_custom_call.1}
  #allocation0 [shape = 'u32[]', space=smem, size = 0x4, offset = 0x4, fixed_abs, tag = 'smem constant byte address 0x4 - core index']
  #allocation1 [shape = 'u32[144,128]{1,0:T(1,128)}', space=vmem, size = 0x12000, scoped, tag = 'internal scratch']
  #allocation2 [shape = 'f32[2,128]{1,0:T(2,128)}', space=vmem, size = 0x400, scoped, tag = 'scratch operand']
  #allocation3 [shape = 'f32[1,1]{1,0:T(1,128)S(6)}', space=smem, size = 0x200, scoped, tag = 'scoped memory for tpu_custom_call.1']
  %s0 = inlined_call_operand.hbm [shape: bf16[2,1024], index: 0, kind: input, shape index: {}]
  %s1 = inlined_call_operand.hbm [shape: bf16[1024,128], index: 1, kind: input, shape index: {}]
  %s2 = inlined_call_operand.vmem [shape: f32[1,128], index: 2, kind: input, shape index: {}]
  %s3 = inlined_call_operand.vmem [shape: f32[1,128], index: 3, kind: input, shape index: {}]
  %s4 = inlined_call_operand.<no memory space> [shape: f32[1,1], index: 4, kind: input, shape index: {}]
  %s5 = inlined_call_operand.hbm [shape: f32[1,8,128], index: 5, kind: output, shape index: {}]
  %s6 = sld [smem:[#allocation0]]
  $region46: #{tpu_custom_call.1} parent=0
    _
  %s8 = ssub.s32 1, %s6
  %s9 = scalar_select 0, %s8, %s6
  %10 = sst [smem:[#allocation3]] %s4
  $region1: #{tpu_custom_call.1} parent=0
    #allocation4 [shape = 'u8[4096]{0}', space=vmem, size = 0x1000, scoped, tag = 'input window, operand 0, single buffered']
    #allocation5 [shape = 's32[1]{0}', space=sflag, size = 0x4, scoped, tag = 'scoped memory for tpu_custom_call.1']
    #allocation6 [shape = 's32[1]{0}', space=sflag, size = 0x4, scoped, tag = 'scoped memory for tpu_custom_call.1']
    #allocation7 [shape = 'u8[262144]{0}', space=vmem, size = 0x40000, scoped, tag = 'input window, operand 1, single buffered']
    #allocation8 [shape = 's32[1]{0}', space=sflag, size = 0x4, scoped, tag = 'scoped memory for tpu_custom_call.1']
    #allocation9 [shape = 'u8[4096]{0}', space=vmem, size = 0x1000, scoped, tag = 'output window, operand 0, single buffered']
    %11 = vsyncpa [#allocation5], 0
    %12 = vsyncpa [#allocation8], 0
    %13 = vsyncpa [#allocation6], 0
    // Predicated region
    $region2: #{tpu_custom_call.1} parent=1 // pred_check
      _
    $region3: #{tpu_custom_call.1} parent=1 // pred_check_branch
      %15 = sbr.rel (0) target = $region5
    $region4: #{tpu_custom_call.1} parent=1 // pred_region
      %s17 = ssub.s32 128, 128
      %18 = vsyncadd [#allocation5], %s17
      %s20 = sshll.u32 [#allocation4], 4
      %s21 = int_to_ptr.vmem [resolvable:$true] %s20
      %23 = dma.hbm_to_vmem [thread:$0]  %s0, 128, %s21, [#allocation5]
    $region5: #{tpu_custom_call.1} parent=1 // pred_fallthru
      _
    // Predicated region
    $region6: #{tpu_custom_call.1} parent=1 // pred_check
      _
    $region7: #{tpu_custom_call.1} parent=1 // pred_check_branch
      %25 = sbr.rel (0) target = $region9
    $region8: #{tpu_custom_call.1} parent=1 // pred_region
      %s27 = ssub.s32 8192, 8192
      %28 = vsyncadd [#allocation8], %s27
      %s29 = sshll.u32 [#allocation7], 4
      %s30 = int_to_ptr.vmem [resolvable:$true] %s29
      %35 = dma.hbm_to_vmem [thread:$0]  %s1, 8192, %s30, [#allocation8], 64, 64, 4
    $region9: #{tpu_custom_call.1} parent=1 // pred_fallthru
      _
    // Predicated region
    $region10: #{tpu_custom_call.1} parent=1 // pred_check
      _
    $region11: #{tpu_custom_call.1} parent=1 // pred_check_branch
      %37 = sbr.rel (0) target = $region13
    $region12: #{tpu_custom_call.1} parent=1 // pred_region
      _
    $region13: #{tpu_custom_call.1} parent=1 // pred_fallthru
      _
    // Predicated region
    $region14: #{tpu_custom_call.1} parent=1 // pred_check
      _
    $region15: #{tpu_custom_call.1} parent=1 // pred_check_branch
      %39 = sbr.rel (0) target = $region17
    $region16: #{tpu_custom_call.1} parent=1 // pred_region
      _
    $region17: #{tpu_custom_call.1} parent=1 // pred_fallthru
      _
    // Predicated region
    $region18: #{tpu_custom_call.1} parent=1 // pred_check
      _
    $region19: #{tpu_custom_call.1} parent=1 // pred_check_branch
      %41 = sbr.rel (0) target = $region21
    $region20: #{tpu_custom_call.1} parent=1 // pred_region
      _
    $region21: #{tpu_custom_call.1} parent=1 // pred_fallthru
      _
    // Predicated region
    $region22: #{tpu_custom_call.1} parent=1 // pred_check
      _
    $region23: #{tpu_custom_call.1} parent=1 // pred_check_branch
      %43 = sbr.rel (0) target = $region25
    $region24: #{tpu_custom_call.1} parent=1 // pred_region
      %44 = dma.done [#allocation5], 128
    $region25: #{tpu_custom_call.1} parent=1 // pred_fallthru
      _
    // Predicated region
    $region26: #{tpu_custom_call.1} parent=1 // pred_check
      _
    $region27: #{tpu_custom_call.1} parent=1 // pred_check_branch
      %46 = sbr.rel (0) target = $region29
    $region28: #{tpu_custom_call.1} parent=1 // pred_region
      %47 = dma.done [#allocation8], 8192
    $region29: #{tpu_custom_call.1} parent=1 // pred_fallthru
      _
    %p49 = scmp.eq.s32.totalorder 0, 0
    // Predicated region
    $region30: #{tpu_custom_call.1} parent=1 // pred_check
      %p50 = pneg %p49
    $region31: #{tpu_custom_call.1} parent=1 // pred_check_branch
      %52 = sbr.rel (%p50) target = $region33
    $region32: #{tpu_custom_call.1} parent=1 // pred_region
      %53 = vst [vmem:[#allocation2] sm:$0x3] 0.0
    $region33: #{tpu_custom_call.1} parent=1 // pred_fallthru
      _
    %v54 = vld [vmem:[#allocation2] sm:$0x3]
    %v55 = vld [vmem:[#allocation4] sm:$0xff]
    %v56 = vld [vmem:[#allocation7] sm:$0xf]
    %v57 = vld [vmem:[#allocation7 + $0x4] sm:$0xf]
    %v58 = vld [vmem:[#allocation7 + $0x8] sm:$0xf]
    %v59 = vld [vmem:[#allocation7 + $0xc] sm:$0xf]
    %v60 = vld [vmem:[#allocation7 + $0x10] sm:$0xf]
    %v61 = vld [vmem:[#allocation7 + $0x14] sm:$0xf]
    %v62 = vld [vmem:[#allocation7 + $0x18] sm:$0xf]
    %v63 = vld [vmem:[#allocation7 + $0x1c] sm:$0xf]
    %v64 = vld [vmem:[#allocation7 + $0x20] sm:$0xf]
    %v65 = vld [vmem:[#allocation7 + $0x24] sm:$0xf]
    %v66 = vld [vmem:[#allocation7 + $0x28] sm:$0xf]
    %v67 = vld [vmem:[#allocation7 + $0x2c] sm:$0xf]
    %v68 = vld [vmem:[#allocation7 + $0x30] sm:$0xf]
    %v69 = vld [vmem:[#allocation7 + $0x34] sm:$0xf]
    %v70 = vld [vmem:[#allocation7 + $0x38] sm:$0xf]
    %v71 = vld [vmem:[#allocation7 + $0x3c] sm:$0xf]
    %v72 = vld [vmem:[#allocation7 + $0x40] sm:$0xf]
    %v73 = vld [vmem:[#allocation7 + $0x44] sm:$0xf]
    %v74 = vld [vmem:[#allocation7 + $0x48] sm:$0xf]
    %v75 = vld [vmem:[#allocation7 + $0x4c] sm:$0xf]
    %v76 = vld [vmem:[#allocation7 + $0x50] sm:$0xf]
    %v77 = vld [vmem:[#allocation7 + $0x54] sm:$0xf]
    %v78 = vld [vmem:[#allocation7 + $0x58] sm:$0xf]
    %v79 = vld [vmem:[#allocation7 + $0x5c] sm:$0xf]
    %v80 = vld [vmem:[#allocation7 + $0x60] sm:$0xf]
    %v81 = vld [vmem:[#allocation7 + $0x64] sm:$0xf]
    %v82 = vld [vmem:[#allocation7 + $0x68] sm:$0xf]
    %v83 = vld [vmem:[#allocation7 + $0x6c] sm:$0xf]
    %v84 = vld [vmem:[#allocation7 + $0x70] sm:$0xf]
    %v85 = vld [vmem:[#allocation7 + $0x74] sm:$0xf]
    %v86 = vld [vmem:[#allocation7 + $0x78] sm:$0xf]
    %v87 = vld [vmem:[#allocation7 + $0x7c] sm:$0xf]
    %v88 = vld [vmem:[#allocation7 + $0x80] sm:$0xf]
    %v89 = vld [vmem:[#allocation7 + $0x84] sm:$0xf]
    %v90 = vld [vmem:[#allocation7 + $0x88] sm:$0xf]
    %v91 = vld [vmem:[#allocation7 + $0x8c] sm:$0xf]
    %v92 = vld [vmem:[#allocation7 + $0x90] sm:$0xf]
    %v93 = vld [vmem:[#allocation7 + $0x94] sm:$0xf]
    %v94 = vld [vmem:[#allocation7 + $0x98] sm:$0xf]
    %v95 = vld [vmem:[#allocation7 + $0x9c] sm:$0xf]
    %v96 = vld [vmem:[#allocation7 + $0xa0] sm:$0xf]
    %v97 = vld [vmem:[#allocation7 + $0xa4] sm:$0xf]
    %v98 = vld [vmem:[#allocation7 + $0xa8] sm:$0xf]
    %v99 = vld [vmem:[#allocation7 + $0xac] sm:$0xf]
    %v100 = vld [vmem:[#allocation7 + $0xb0] sm:$0xf]
    %v101 = vld [vmem:[#allocation7 + $0xb4] sm:$0xf]
    %v102 = vld [vmem:[#allocation7 + $0xb8] sm:$0xf]
    %v103 = vld [vmem:[#allocation7 + $0xbc] sm:$0xf]
    %v104 = vld [vmem:[#allocation7 + $0xc0] sm:$0xf]
    %v105 = vld [vmem:[#allocation7 + $0xc4] sm:$0xf]
    %v106 = vld [vmem:[#allocation7 + $0xc8] sm:$0xf]
    %v107 = vld [vmem:[#allocation7 + $0xcc] sm:$0xf]
    %v108 = vld [vmem:[#allocation7 + $0xd0] sm:$0xf]
    %v109 = vld [vmem:[#allocation7 + $0xd4] sm:$0xf]
    %v110 = vld [vmem:[#allocation7 + $0xd8] sm:$0xf]
    %v111 = vld [vmem:[#allocation7 + $0xdc] sm:$0xf]
    %v112 = vld [vmem:[#allocation7 + $0xe0] sm:$0xf]
    %v113 = vld [vmem:[#allocation7 + $0xe4] sm:$0xf]
    %v114 = vld [vmem:[#allocation7 + $0xe8] sm:$0xf]
    %v115 = vld [vmem:[#allocation7 + $0xec] sm:$0xf]
    %v116 = vld [vmem:[#allocation7 + $0xf0] sm:$0xf]
    %v117 = vld [vmem:[#allocation7 + $0xf4] sm:$0xf]
    %v118 = vld [vmem:[#allocation7 + $0xf8] sm:$0xf]
    %v119 = vld [vmem:[#allocation7 + $0xfc] sm:$0xf]
    %v120 = vld [vmem:[#allocation7 + $0x100] sm:$0xf]
    %v121 = vld [vmem:[#allocation7 + $0x104] sm:$0xf]
    %v122 = vld [vmem:[#allocation7 + $0x108] sm:$0xf]
    %v123 = vld [vmem:[#allocation7 + $0x10c] sm:$0xf]
    %v124 = vld [vmem:[#allocation7 + $0x110] sm:$0xf]
    %v125 = vld [vmem:[#allocation7 + $0x114] sm:$0xf]
    %v126 = vld [vmem:[#allocation7 + $0x118] sm:$0xf]
    %v127 = vld [vmem:[#allocation7 + $0x11c] sm:$0xf]
    %v128 = vld [vmem:[#allocation7 + $0x120] sm:$0xf]
    %v129 = vld [vmem:[#allocation7 + $0x124] sm:$0xf]
    %v130 = vld [vmem:[#allocation7 + $0x128] sm:$0xf]
    %v131 = vld [vmem:[#allocation7 + $0x12c] sm:$0xf]
    %v132 = vld [vmem:[#allocation7 + $0x130] sm:$0xf]
    %v133 = vld [vmem:[#allocation7 + $0x134] sm:$0xf]
    %v134 = vld [vmem:[#allocation7 + $0x138] sm:$0xf]
    %v135 = vld [vmem:[#allocation7 + $0x13c] sm:$0xf]
    %v136 = vld [vmem:[#allocation7 + $0x140] sm:$0xf]
    %v137 = vld [vmem:[#allocation7 + $0x144] sm:$0xf]
    %v138 = vld [vmem:[#allocation7 + $0x148] sm:$0xf]
    %v139 = vld [vmem:[#allocation7 + $0x14c] sm:$0xf]
    %v140 = vld [vmem:[#allocation7 + $0x150] sm:$0xf]
    %v141 = vld [vmem:[#allocation7 + $0x154] sm:$0xf]
    %v142 = vld [vmem:[#allocation7 + $0x158] sm:$0xf]
    %v143 = vld [vmem:[#allocation7 + $0x15c] sm:$0xf]
    %v144 = vld [vmem:[#allocation7 + $0x160] sm:$0xf]
    %v145 = vld [vmem:[#allocation7 + $0x164] sm:$0xf]
    %v146 = vld [vmem:[#allocation7 + $0x168] sm:$0xf]
    %v147 = vld [vmem:[#allocation7 + $0x16c] sm:$0xf]
    %v148 = vld [vmem:[#allocation7 + $0x170] sm:$0xf]
    %v149 = vld [vmem:[#allocation7 + $0x174] sm:$0xf]
    %v150 = vld [vmem:[#allocation7 + $0x178] sm:$0xf]
    %v151 = vld [vmem:[#allocation7 + $0x17c] sm:$0xf]
    %v152 = vld [vmem:[#allocation7 + $0x180] sm:$0xf]
    %v153 = vld [vmem:[#allocation7 + $0x184] sm:$0xf]
    %v154 = vld [vmem:[#allocation7 + $0x188] sm:$0xf]
    %v155 = vld [vmem:[#allocation7 + $0x18c] sm:$0xf]
    %v156 = vld [vmem:[#allocation7 + $0x190] sm:$0xf]
    %v157 = vld [vmem:[#allocation7 + $0x194] sm:$0xf]
    %v158 = vld [vmem:[#allocation7 + $0x198] sm:$0xf]
    %v159 = vld [vmem:[#allocation7 + $0x19c] sm:$0xf]
    %v160 = vld [vmem:[#allocation7 + $0x1a0] sm:$0xf]
    %v161 = vld [vmem:[#allocation7 + $0x1a4] sm:$0xf]
    %v162 = vld [vmem:[#allocation7 + $0x1a8] sm:$0xf]
    %v163 = vld [vmem:[#allocation7 + $0x1ac] sm:$0xf]
    %v164 = vld [vmem:[#allocation7 + $0x1b0] sm:$0xf]
    %v165 = vld [vmem:[#allocation7 + $0x1b4] sm:$0xf]
    %v166 = vld [vmem:[#allocation7 + $0x1b8] sm:$0xf]
    %v167 = vld [vmem:[#allocation7 + $0x1bc] sm:$0xf]
    %v168 = vld [vmem:[#allocation7 + $0x1c0] sm:$0xf]
    %v169 = vld [vmem:[#allocation7 + $0x1c4] sm:$0xf]
    %v170 = vld [vmem:[#allocation7 + $0x1c8] sm:$0xf]
    %v171 = vld [vmem:[#allocation7 + $0x1cc] sm:$0xf]
    %v172 = vld [vmem:[#allocation7 + $0x1d0] sm:$0xf]
    %v173 = vld [vmem:[#allocation7 + $0x1d4] sm:$0xf]
    %v174 = vld [vmem:[#allocation7 + $0x1d8] sm:$0xf]
    %v175 = vld [vmem:[#allocation7 + $0x1dc] sm:$0xf]
    %v176 = vld [vmem:[#allocation7 + $0x1e0] sm:$0xf]
    %v177 = vld [vmem:[#allocation7 + $0x1e4] sm:$0xf]
    %v178 = vld [vmem:[#allocation7 + $0x1e8] sm:$0xf]
    %v179 = vld [vmem:[#allocation7 + $0x1ec] sm:$0xf]
    %v180 = vld [vmem:[#allocation7 + $0x1f0] sm:$0xf]
    %v181 = vld [vmem:[#allocation7 + $0x1f4] sm:$0xf]
    %v182 = vld [vmem:[#allocation7 + $0x1f8] sm:$0xf]
    %v183 = vld [vmem:[#allocation7 + $0x1fc] sm:$0xf]
    %v185 = vcombine.high %v55, %v55
    %v187 = vunpack.c.l.s4 1966171168
    %v188 = vunpack.c.0.s8 %v187
    %v189 = vlaneseq
    %v190 = vshrl.u32 %v189, 7
    %v191 = vsub.s32 %v188, %v190
    %v192 = vrot.slane %v55, %v191
    %v194 = vunpack.c.l.s4 1966171168
    %v195 = vunpack.c.0.s8 %v194
    %v196 = vlaneseq
    %v197 = vshrl.u32 %v196, 7
    %v198 = vsub.s32 %v195, %v197
    %v199 = vrot.slane %v185, %v198
    %v200 = vcombine.high %v192, %v192
    %v201 = vcombine.high %v199, %v199
    %v203 = vunpack.c.l.s4 1966171168
    %v204 = vunpack.c.0.s8 %v203
    %v205 = vlaneseq
    %v206 = vshrl.u32 %v205, 7
    %v207 = vsub.s32 %v204, %v206
    %v208 = vrot.slane %v192, %v207
    %v210 = vunpack.c.l.s4 1966171168
    %v211 = vunpack.c.0.s8 %v210
    %v212 = vlaneseq
    %v213 = vshrl.u32 %v212, 7
    %v214 = vsub.s32 %v211, %v213
    %v215 = vrot.slane %v199, %v214
    %v217 = vunpack.c.l.s4 1966171168
    %v218 = vunpack.c.0.s8 %v217
    %v219 = vlaneseq
    %v220 = vshrl.u32 %v219, 7
    %v221 = vsub.s32 %v218, %v220
    %v222 = vrot.slane %v200, %v221
    %v224 = vunpack.c.l.s4 1966171168
    %v225 = vunpack.c.0.s8 %v224
    %v226 = vlaneseq
    %v227 = vshrl.u32 %v226, 7
    %v228 = vsub.s32 %v225, %v227
    %v229 = vrot.slane %v201, %v228
    %v230 = vcombine.high %v208, %v208
    %v231 = vcombine.high %v215, %v215
    %v232 = vcombine.high %v222, %v222
    %v233 = vcombine.high %v229, %v229
    %v370 = vunpack.c.l.b16 %v56
    %v371 = vunpack.c.l.b16 %v57
    %v372 = vunpack.c.l.b16 %v58
    %v373 = vunpack.c.l.b16 %v59
    %v374 = vunpack.c.l.b16 %v60
    %v375 = vunpack.c.l.b16 %v61
    %v376 = vunpack.c.l.b16 %v62
    %v377 = vunpack.c.l.b16 %v63
    %v378 = vunpack.c.l.b16 %v64
    %v379 = vunpack.c.l.b16 %v65
    %v380 = vunpack.c.l.b16 %v66
    %v381 = vunpack.c.l.b16 %v67
    %v382 = vunpack.c.l.b16 %v68
    %v383 = vunpack.c.l.b16 %v69
    %v384 = vunpack.c.l.b16 %v70
    %v385 = vunpack.c.l.b16 %v71
    %v386 = vunpack.c.l.b16 %v72
    %v387 = vunpack.c.l.b16 %v73
    %v388 = vunpack.c.l.b16 %v74
    %v389 = vunpack.c.l.b16 %v75
    %v390 = vunpack.c.l.b16 %v76
    %v391 = vunpack.c.l.b16 %v77
    %v392 = vunpack.c.l.b16 %v78
    %v393 = vunpack.c.l.b16 %v79
    %v394 = vunpack.c.l.b16 %v80
    %v395 = vunpack.c.l.b16 %v81
    %v396 = vunpack.c.l.b16 %v82
    %v397 = vunpack.c.l.b16 %v83
    %v398 = vunpack.c.l.b16 %v84
    %v399 = vunpack.c.l.b16 %v85
    %v400 = vunpack.c.l.b16 %v86
    %v401 = vunpack.c.l.b16 %v87
    %v402 = vunpack.c.l.b16 %v88
    %v403 = vunpack.c.l.b16 %v89
    %v404 = vunpack.c.l.b16 %v90
    %v405 = vunpack.c.l.b16 %v91
    %v406 = vunpack.c.l.b16 %v92
    %v407 = vunpack.c.l.b16 %v93
    %v408 = vunpack.c.l.b16 %v94
    %v409 = vunpack.c.l.b16 %v95
    %v410 = vunpack.c.l.b16 %v96
    %v411 = vunpack.c.l.b16 %v97
    %v412 = vunpack.c.l.b16 %v98
    %v413 = vunpack.c.l.b16 %v99
    %v414 = vunpack.c.l.b16 %v100
    %v415 = vunpack.c.l.b16 %v101
    %v416 = vunpack.c.l.b16 %v102
    %v417 = vunpack.c.l.b16 %v103
    %v418 = vunpack.c.l.b16 %v104
    %v419 = vunpack.c.l.b16 %v105
    %v420 = vunpack.c.l.b16 %v106
    %v421 = vunpack.c.l.b16 %v107
    %v422 = vunpack.c.l.b16 %v108
    %v423 = vunpack.c.l.b16 %v109
    %v424 = vunpack.c.l.b16 %v110
    %v425 = vunpack.c.l.b16 %v111
    %v426 = vunpack.c.l.b16 %v112
    %v427 = vunpack.c.l.b16 %v113
    %v428 = vunpack.c.l.b16 %v114
    %v429 = vunpack.c.l.b16 %v115
    %v430 = vunpack.c.l.b16 %v116
    %v431 = vunpack.c.l.b16 %v117
    %v432 = vunpack.c.l.b16 %v118
    %v433 = vunpack.c.l.b16 %v119
    %v434 = vunpack.c.l.b16 %v120
    %v435 = vunpack.c.l.b16 %v121
    %v436 = vunpack.c.l.b16 %v122
    %v437 = vunpack.c.l.b16 %v123
    %v438 = vunpack.c.l.b16 %v124
    %v439 = vunpack.c.l.b16 %v125
    %v440 = vunpack.c.l.b16 %v126
    %v441 = vunpack.c.l.b16 %v127
    %v442 = vunpack.c.l.b16 %v128
    %v443 = vunpack.c.l.b16 %v129
    %v444 = vunpack.c.l.b16 %v130
    %v445 = vunpack.c.l.b16 %v131
    %v446 = vunpack.c.l.b16 %v132
    %v447 = vunpack.c.l.b16 %v133
    %v448 = vunpack.c.l.b16 %v134
    %v449 = vunpack.c.l.b16 %v135
    %v450 = vunpack.c.l.b16 %v136
    %v451 = vunpack.c.l.b16 %v137
    %v452 = vunpack.c.l.b16 %v138
    %v453 = vunpack.c.l.b16 %v139
    %v454 = vunpack.c.l.b16 %v140
    %v455 = vunpack.c.l.b16 %v141
    %v456 = vunpack.c.l.b16 %v142
    %v457 = vunpack.c.l.b16 %v143
    %v458 = vunpack.c.l.b16 %v144
    %v459 = vunpack.c.l.b16 %v145
    %v460 = vunpack.c.l.b16 %v146
    %v461 = vunpack.c.l.b16 %v147
    %v462 = vunpack.c.l.b16 %v148
    %v463 = vunpack.c.l.b16 %v149
    %v464 = vunpack.c.l.b16 %v150
    %v465 = vunpack.c.l.b16 %v151
    %v466 = vunpack.c.l.b16 %v152
    %v467 = vunpack.c.l.b16 %v153
    %v468 = vunpack.c.l.b16 %v154
    %v469 = vunpack.c.l.b16 %v155
    %v470 = vunpack.c.l.b16 %v156
    %v471 = vunpack.c.l.b16 %v157
    %v472 = vunpack.c.l.b16 %v158
    %v473 = vunpack.c.l.b16 %v159
    %v474 = vunpack.c.l.b16 %v160
    %v475 = vunpack.c.l.b16 %v161
    %v476 = vunpack.c.l.b16 %v162
    %v477 = vunpack.c.l.b16 %v163
    %v478 = vunpack.c.l.b16 %v164
    %v479 = vunpack.c.l.b16 %v165
    %v480 = vunpack.c.l.b16 %v166
    %v481 = vunpack.c.l.b16 %v167
    %v482 = vunpack.c.l.b16 %v168
    %v483 = vunpack.c.l.b16 %v169
    %v484 = vunpack.c.l.b16 %v170
    %v485 = vunpack.c.l.b16 %v171
    %v486 = vunpack.c.l.b16 %v172
    %v487 = vunpack.c.l.b16 %v173
    %v488 = vunpack.c.l.b16 %v174
    %v489 = vunpack.c.l.b16 %v175
    %v490 = vunpack.c.l.b16 %v176
    %v491 = vunpack.c.l.b16 %v177
    %v492 = vunpack.c.l.b16 %v178
    %v493 = vunpack.c.l.b16 %v179
    %v494 = vunpack.c.l.b16 %v180
    %v495 = vunpack.c.l.b16 %v181
    %v496 = vunpack.c.l.b16 %v182
    %v497 = vunpack.c.l.b16 %v183
    %v498 = vpack.c.b16 %v371, %v370
    %v499 = vpack.c.b16 %v373, %v372
    %v500 = vpack.c.b16 %v375, %v374
    %v501 = vpack.c.b16 %v377, %v376
    %v502 = vpack.c.b16 %v379, %v378
    %v503 = vpack.c.b16 %v381, %v380
    %v504 = vpack.c.b16 %v383, %v382
    %v505 = vpack.c.b16 %v385, %v384
    %v506 = vpack.c.b16 %v387, %v386
    %v507 = vpack.c.b16 %v389, %v388
    %v508 = vpack.c.b16 %v391, %v390
    %v509 = vpack.c.b16 %v393, %v392
    %v510 = vpack.c.b16 %v395, %v394
    %v511 = vpack.c.b16 %v397, %v396
    %v512 = vpack.c.b16 %v399, %v398
    %v513 = vpack.c.b16 %v401, %v400
    %v514 = vpack.c.b16 %v403, %v402
    %v515 = vpack.c.b16 %v405, %v404
    %v516 = vpack.c.b16 %v407, %v406
    %v517 = vpack.c.b16 %v409, %v408
    %v518 = vpack.c.b16 %v411, %v410
    %v519 = vpack.c.b16 %v413, %v412
    %v520 = vpack.c.b16 %v415, %v414
    %v521 = vpack.c.b16 %v417, %v416
    %v522 = vpack.c.b16 %v419, %v418
    %v523 = vpack.c.b16 %v421, %v420
    %v524 = vpack.c.b16 %v423, %v422
    %v525 = vpack.c.b16 %v425, %v424
    %v526 = vpack.c.b16 %v427, %v426
    %v527 = vpack.c.b16 %v429, %v428
    %v528 = vpack.c.b16 %v431, %v430
    %v529 = vpack.c.b16 %v433, %v432
    %v530 = vpack.c.b16 %v435, %v434
    %v531 = vpack.c.b16 %v437, %v436
    %v532 = vpack.c.b16 %v439, %v438
    %v533 = vpack.c.b16 %v441, %v440
    %v534 = vpack.c.b16 %v443, %v442
    %v535 = vpack.c.b16 %v445, %v444
    %v536 = vpack.c.b16 %v447, %v446
    %v537 = vpack.c.b16 %v449, %v448
    %v538 = vpack.c.b16 %v451, %v450
    %v539 = vpack.c.b16 %v453, %v452
    %v540 = vpack.c.b16 %v455, %v454
    %v541 = vpack.c.b16 %v457, %v456
    %v542 = vpack.c.b16 %v459, %v458
    %v543 = vpack.c.b16 %v461, %v460
    %v544 = vpack.c.b16 %v463, %v462
    %v545 = vpack.c.b16 %v465, %v464
    %v546 = vpack.c.b16 %v467, %v466
    %v547 = vpack.c.b16 %v469, %v468
    %v548 = vpack.c.b16 %v471, %v470
    %v549 = vpack.c.b16 %v473, %v472
    %v550 = vpack.c.b16 %v475, %v474
    %v551 = vpack.c.b16 %v477, %v476
    %v552 = vpack.c.b16 %v479, %v478
    %v553 = vpack.c.b16 %v481, %v480
    %v554 = vpack.c.b16 %v483, %v482
    %v555 = vpack.c.b16 %v485, %v484
    %v556 = vpack.c.b16 %v487, %v486
    %v557 = vpack.c.b16 %v489, %v488
    %v558 = vpack.c.b16 %v491, %v490
    %v559 = vpack.c.b16 %v493, %v492
    %v560 = vpack.c.b16 %v495, %v494
    %v561 = vpack.c.b16 %v497, %v496
    %626 = vmatprep.subr.bf16.mxu0 0
    %627 = vmatpush1.bf16.msra.mxu0 %v498
    %628 = vmatprep.subr.bf16.mxu0 0
    %629 = vmatpush1.bf16.msra.mxu0 %v499
    %630 = vmatprep.subr.bf16.mxu0 0
    %631 = vmatpush1.bf16.msra.mxu0 %v500
    %632 = vmatprep.subr.bf16.mxu0 0
    %633 = vmatpush1.bf16.msra.mxu0 %v501
    %634 = vmatprep.subr.bf16.mxu0 0
    %635 = vmatpush1.bf16.msra.mxu0 %v502
    %636 = vmatprep.subr.bf16.mxu0 0
    %637 = vmatpush1.bf16.msra.mxu0 %v503
    %638 = vmatprep.subr.bf16.mxu0 0
    %639 = vmatpush1.bf16.msra.mxu0 %v504
    %640 = vmatprep.subr.bf16.mxu0 0
    %641 = vmatpush1.bf16.msra.mxu0 %v505
    %642 = vmatprep.subr.bf16.mxu0 0
    %643 = vmatpush1.bf16.msra.mxu0 %v506
    %644 = vmatprep.subr.bf16.mxu0 0
    %645 = vmatpush1.bf16.msra.mxu0 %v507
    %646 = vmatprep.subr.bf16.mxu0 0
    %647 = vmatpush1.bf16.msra.mxu0 %v508
    %648 = vmatprep.subr.bf16.mxu0 0
    %649 = vmatpush1.bf16.msra.mxu0 %v509
    %650 = vmatprep.subr.bf16.mxu0 0
    %651 = vmatpush1.bf16.msra.mxu0 %v510
    %652 = vmatprep.subr.bf16.mxu0 0
    %653 = vmatpush1.bf16.msra.mxu0 %v511
    %654 = vmatprep.subr.bf16.mxu0 0
    %655 = vmatpush1.bf16.msra.mxu0 %v512
    %656 = vmatprep.subr.bf16.mxu0 0
    %657 = vmatpush1.bf16.msra.mxu0 %v513
    %658 = vmatprep.mubr.bf16.mxu0 %v222
    %659 = vmatmul.mubr.bf16.gmra.mrb[0].mxu0 %v208
    %v660 = vpop.f32.mrb[0].mxu0
    %v661 = vadd.f32 0.0, %v660
    %v662 = vpop.f32.mrb[0].mxu0
    %v663 = vpop.f32.mrb[0].mxu0
    %v664 = vpop.f32.mrb[0].mxu0
    %665 = vdwg.mxu0
    %666 = vmatprep.subr.bf16.mxu0 0
    %667 = vmatpush1.bf16.msra.mxu0 %v514
    %668 = vmatprep.subr.bf16.mxu0 0
    %669 = vmatpush1.bf16.msra.mxu0 %v515
    %670 = vmatprep.subr.bf16.mxu0 0
    %671 = vmatpush1.bf16.msra.mxu0 %v516
    %672 = vmatprep.subr.bf16.mxu0 0
    %673 = vmatpush1.bf16.msra.mxu0 %v517
    %674 = vmatprep.subr.bf16.mxu0 0
    %675 = vmatpush1.bf16.msra.mxu0 %v518
    %676 = vmatprep.subr.bf16.mxu0 0
    %677 = vmatpush1.bf16.msra.mxu0 %v519
    %678 = vmatprep.subr.bf16.mxu0 0
    %679 = vmatpush1.bf16.msra.mxu0 %v520
    %680 = vmatprep.subr.bf16.mxu0 0
    %681 = vmatpush1.bf16.msra.mxu0 %v521
    %682 = vmatprep.subr.bf16.mxu0 0
    %683 = vmatpush1.bf16.msra.mxu0 %v522
    %684 = vmatprep.subr.bf16.mxu0 0
    %685 = vmatpush1.bf16.msra.mxu0 %v523
    %686 = vmatprep.subr.bf16.mxu0 0
    %687 = vmatpush1.bf16.msra.mxu0 %v524
    %688 = vmatprep.subr.bf16.mxu0 0
    %689 = vmatpush1.bf16.msra.mxu0 %v525
    %690 = vmatprep.subr.bf16.mxu0 0
    %691 = vmatpush1.bf16.msra.mxu0 %v526
    %692 = vmatprep.subr.bf16.mxu0 0
    %693 = vmatpush1.bf16.msra.mxu0 %v527
    %694 = vmatprep.subr.bf16.mxu0 0
    %695 = vmatpush1.bf16.msra.mxu0 %v528
    %696 = vmatprep.subr.bf16.mxu0 0
    %697 = vmatpush1.bf16.msra.mxu0 %v529
    %698 = vmatprep.mubr.bf16.mxu0 %v232
    %699 = vmatmul.mubr.bf16.gmra.mrb[0].mxu0 %v230
    %v700 = vpop.f32.mrb[0].mxu0
    %v701 = vadd.f32 %v661, %v700
    %v702 = vpop.f32.mrb[0].mxu0
    %v703 = vpop.f32.mrb[0].mxu0
    %v704 = vpop.f32.mrb[0].mxu0
    %705 = vdwg.mxu0
    %706 = vmatprep.subr.bf16.mxu0 0
    %707 = vmatpush1.bf16.msra.mxu0 %v530
    %708 = vmatprep.subr.bf16.mxu0 0
    %709 = vmatpush1.bf16.msra.mxu0 %v531
    %710 = vmatprep.subr.bf16.mxu0 0
    %711 = vmatpush1.bf16.msra.mxu0 %v532
    %712 = vmatprep.subr.bf16.mxu0 0
    %713 = vmatpush1.bf16.msra.mxu0 %v533
    %714 = vmatprep.subr.bf16.mxu0 0
    %715 = vmatpush1.bf16.msra.mxu0 %v534
    %716 = vmatprep.subr.bf16.mxu0 0
    %717 = vmatpush1.bf16.msra.mxu0 %v535
    %718 = vmatprep.subr.bf16.mxu0 0
    %719 = vmatpush1.bf16.msra.mxu0 %v536
    %720 = vmatprep.subr.bf16.mxu0 0
    %721 = vmatpush1.bf16.msra.mxu0 %v537
    %722 = vmatprep.subr.bf16.mxu0 0
    %723 = vmatpush1.bf16.msra.mxu0 %v538
    %724 = vmatprep.subr.bf16.mxu0 0
    %725 = vmatpush1.bf16.msra.mxu0 %v539
    %726 = vmatprep.subr.bf16.mxu0 0
    %727 = vmatpush1.bf16.msra.mxu0 %v540
    %728 = vmatprep.subr.bf16.mxu0 0
    %729 = vmatpush1.bf16.msra.mxu0 %v541
    %730 = vmatprep.subr.bf16.mxu0 0
    %731 = vmatpush1.bf16.msra.mxu0 %v542
    %732 = vmatprep.subr.bf16.mxu0 0
    %733 = vmatpush1.bf16.msra.mxu0 %v543
    %734 = vmatprep.subr.bf16.mxu0 0
    %735 = vmatpush1.bf16.msra.mxu0 %v544
    %736 = vmatprep.subr.bf16.mxu0 0
    %737 = vmatpush1.bf16.msra.mxu0 %v545
    %738 = vmatprep.mubr.bf16.mxu0 %v229
    %739 = vmatmul.mubr.bf16.gmra.mrb[0].mxu0 %v215
    %v740 = vpop.f32.mrb[0].mxu0
    %v741 = vadd.f32 %v701, %v740
    %v742 = vpop.f32.mrb[0].mxu0
    %v743 = vpop.f32.mrb[0].mxu0
    %v744 = vpop.f32.mrb[0].mxu0
    %745 = vdwg.mxu0
    %746 = vmatprep.subr.bf16.mxu0 0
    %747 = vmatpush1.bf16.msra.mxu0 %v546
    %748 = vmatprep.subr.bf16.mxu0 0
    %749 = vmatpush1.bf16.msra.mxu0 %v547
    %750 = vmatprep.subr.bf16.mxu0 0
    %751 = vmatpush1.bf16.msra.mxu0 %v548
    %752 = vmatprep.subr.bf16.mxu0 0
    %753 = vmatpush1.bf16.msra.mxu0 %v549
    %754 = vmatprep.subr.bf16.mxu0 0
    %755 = vmatpush1.bf16.msra.mxu0 %v550
    %756 = vmatprep.subr.bf16.mxu0 0
    %757 = vmatpush1.bf16.msra.mxu0 %v551
    %758 = vmatprep.subr.bf16.mxu0 0
    %759 = vmatpush1.bf16.msra.mxu0 %v552
    %760 = vmatprep.subr.bf16.mxu0 0
    %761 = vmatpush1.bf16.msra.mxu0 %v553
    %762 = vmatprep.subr.bf16.mxu0 0
    %763 = vmatpush1.bf16.msra.mxu0 %v554
    %764 = vmatprep.subr.bf16.mxu0 0
    %765 = vmatpush1.bf16.msra.mxu0 %v555
    %766 = vmatprep.subr.bf16.mxu0 0
    %767 = vmatpush1.bf16.msra.mxu0 %v556
    %768 = vmatprep.subr.bf16.mxu0 0
    %769 = vmatpush1.bf16.msra.mxu0 %v557
    %770 = vmatprep.subr.bf16.mxu0 0
    %771 = vmatpush1.bf16.msra.mxu0 %v558
    %772 = vmatprep.subr.bf16.mxu0 0
    %773 = vmatpush1.bf16.msra.mxu0 %v559
    %774 = vmatprep.subr.bf16.mxu0 0
    %775 = vmatpush1.bf16.msra.mxu0 %v560
    %776 = vmatprep.subr.bf16.mxu0 0
    %777 = vmatpush1.bf16.msra.mxu0 %v561
    %778 = vmatprep.mubr.bf16.mxu0 %v233
    %779 = vmatmul.mubr.bf16.gmra.mrb[0].mxu0 %v231
    %v780 = vpop.f32.mrb[0].mxu0
    %v781 = vadd.f32 %v741, %v780
    %v782 = vpop.f32.mrb[0].mxu0
    %v783 = vpop.f32.mrb[0].mxu0
    %v784 = vpop.f32.mrb[0].mxu0
    %785 = vdwg.mxu0
    %v786 = vadd.f32 %v54, %v781
    %787 = vst [vmem:[#allocation2] sm:$0x3] %v786
    // Predicated region
    $region34: #{tpu_custom_call.1} parent=1 // pred_check
      %p788 = pneg %p49
    $region35: #{tpu_custom_call.1} parent=1 // pred_check_branch
      %790 = sbr.rel (%p788) target = $region37
    $region36: #{tpu_custom_call.1} parent=1 // pred_region
      %v791 = vld [vmem:[#allocation2] sm:$0x3]
      %v792 = vld [vmem:[%s2] sm:$0x1]
      %v794 = vlaneseq
      %v795 = vshrl.u32 %v794, 7
      %v796 = vsub.s32 0, %v795
      %v797 = vrot.slane %v792, %v796
      %v799 = vadd.f32 %v791, %v797
      %vm800 = vcmp.gt.f32.partialorder %v799, 0.0
      %v801 = vmul.f32 %v799, 0.2
      %v802 = vsel %vm800, %v799, %v801
      %v803 = vld [vmem:[%s3] sm:$0x1]
      %v805 = vlaneseq
      %v806 = vshrl.u32 %v805, 7
      %v807 = vsub.s32 0, %v806
      %v808 = vrot.slane %v803, %v807
      %v810 = vmul.f32 %v802, %v808
      %vm811 = vcmask 1041408
      %v812 = vsel %vm811, %v810, 0.0
      %813 = vadd.xlane.f32.xlu0 %v812
      %v814 = vpop.xlane.xlu0 %813
      %s815 = sld [smem:[#allocation3]]
      %v816 = vstv %s815
      %v817 = vadd.f32 %v814, %v816
      %v818 = vsub.f32 %v817, 1.0
      %v819 = vmul.f32 %v818, %v818
      %vm820 = vcmask 1024
      %v821 = vsel %vm820, %v819, 0.0
      %822 = vadd.xlane.f32.xlu0 %v821
      %v823 = vpop.xlane.xlu0 %822
      %v824 = vrot.slane %v823, 4
      %v825 = vadd.f32 %v823, %v824
      %v826 = vrot.slane %v825, 2
      %v827 = vadd.f32 %v825, %v826
      %v828 = vrot.slane %v827, 1
      %v829 = vadd.f32 %v827, %v828
      %s830 = vtos %v829
      %v831 = vstv %s830
      %832 = vst [vmem:[#allocation9] sm:$0xff] %v831
    $region37: #{tpu_custom_call.1} parent=1 // pred_fallthru
      _
    // Predicated region
    $region38: #{tpu_custom_call.1} parent=1 // pred_check
      _
    $region39: #{tpu_custom_call.1} parent=1 // pred_check_branch
      %834 = sbr.rel (0) target = $region41
    $region40: #{tpu_custom_call.1} parent=1 // pred_region
      %s836 = ssub.s32 128, 128
      %837 = vsyncadd [#allocation6], %s836
      %s839 = sshll.u32 [#allocation9], 4
      %s840 = int_to_ptr.vmem [resolvable:$true] %s839
      %842 = dma.vmem_to_hbm [thread:$0]  %s840, 128, %s5, [#allocation6]
    $region41: #{tpu_custom_call.1} parent=1 // pred_fallthru
      _
    // Predicated region
    $region42: #{tpu_custom_call.1} parent=1 // pred_check
      _
    $region43: #{tpu_custom_call.1} parent=1 // pred_check_branch
      %844 = sbr.rel (0) target = $region45
    $region44: #{tpu_custom_call.1} parent=1 // pred_region
      %845 = dma.done [#allocation6], 128
    $region45: #{tpu_custom_call.1} parent=1 // pred_fallthru
      _
    %846 = vsyncpa [#allocation5], 1
    %847 = vsyncpa [#allocation8], 1
    %848 = vsyncpa [#allocation6], 1

</llo_original>
